<compile_context>
chip_gen: v7x
topology: tpu7x:2x2x1
jax: 0.10.0
libtpu: 0.0.40
codegen_flags: <defaults>
</compile_context>

<pallas_src>
import jax
import jax.numpy as jnp
from jax.experimental import pallas as pl
from jax.experimental.pallas import tpu as pltpu

LANE = 128
_MASK_BIG = 1e30  # finite "minus infinity" for the additive attention mask


def gated_attn_kernel(q_ref, v_ref, x_ref, mask_ref,
                      attn_vec_ref, w_x_ref, w_c_ref, b_ref,
                      out_ref, probs_ref):
    """One grid step processes TB batches.

    q_ref     : (TB*M, Q)   queries, batch folded into rows
    v_ref     : (TB, N, V)  values
    x_ref     : (TB*M, I)   ori_input, batch folded into rows
    mask_ref  : (TB, 1, N)  1.0 = valid, 0.0 = padded
    attn_vec  : (Q, V)
    w_x_ref   : (I, 2I)     fused [gate | concat] weights, ori_input part
    w_c_ref   : (V, 2I)     fused [gate | concat] weights, context part
    b_ref     : (1, 2I)     fused biases
    out_ref   : (TB*M, I_pad)  final_input, lane-padded (first I cols valid)
    probs_ref : (TB*M, N_pad)  attention probs, lane-padded (first N cols valid)
    """
    tb, n, v_dim = v_ref.shape
    rows, _ = q_ref.shape
    i_dim = x_ref.shape[1]
    m = rows // tb

    q = q_ref[...]
    x = x_ref[...]
    vals = v_ref[...]
    mask = mask_ref[...]                                   # (TB, 1, N)

    # One fat (TB*M, Q) @ (Q, V) matmul for every batch in the block.
    qa = jnp.dot(q, attn_vec_ref[...], preferred_element_type=jnp.float32)
    qa3 = qa.reshape(tb, m, v_dim)                         # (TB, M, V)

    # S = (q @ attn_vec) @ values^T — contract V axes, no explicit transpose.
    s = jnp.einsum('bmv,bnv->bmn', qa3, vals,
                   preferred_element_type=jnp.float32)     # (TB, M, N)

    # Finite additive mask (replaces masked_fill(-inf) + isnan fixup).
    s = s + (mask - 1.0) * _MASK_BIG

    # Softmax over N in f32; reciprocal goes to the (otherwise idle) EUP slot.
    s_max = jnp.max(s, axis=-1, keepdims=True)
    e = jnp.exp(s - s_max)
    denom = jnp.sum(e, axis=-1, keepdims=True)
    probs = e * pl.reciprocal(denom, approx=True)
    # Zero padded entries; also zeroes fully-masked rows (== masked_fill(isnan, 0)).
    probs = probs * mask                                   # (TB, M, N)

    # Context vectors, folded back to (TB*M, V).
    c = jnp.einsum('bmn,bnv->bmv', probs, vals,
                   preferred_element_type=jnp.float32).reshape(rows, v_dim)

    # Fused gate/concat projection: concat([x, C]) @ [[Wg_x|Wc_x],[Wg_c|Wc_c]] + b
    pre = (jnp.dot(x, w_x_ref[...], preferred_element_type=jnp.float32)
           + jnp.dot(c, w_c_ref[...], preferred_element_type=jnp.float32)
           + b_ref[...])                                   # (TB*M, 2I)
    gate = jax.nn.sigmoid(pre[:, :i_dim])
    cand = pre[:, i_dim:]
    final = gate * cand + (1.0 - gate) * x                 # (TB*M, I)

    # Lane-dense stores: pad last dims up to the (128-multiple) output width.
    pad_f = out_ref.shape[1] - i_dim
    if pad_f:
        final = jnp.concatenate(
            [final, jnp.zeros((rows, pad_f), jnp.float32)], axis=-1)
    out_ref[...] = final.astype(out_ref.dtype)

    probs2 = probs.reshape(rows, n)
    pad_p = probs_ref.shape[1] - n
    if pad_p:
        probs2 = jnp.concatenate(
            [probs2, jnp.zeros((rows, pad_p), jnp.float32)], axis=-1)
    probs_ref[...] = probs2.astype(probs_ref.dtype)


def _round_up(x, mult):
    return ((x + mult - 1) // mult) * mult


def gated_attn_update(query, values, ori_input, attn_mask, params,
                      *, batch_block=None):
    """Pallas forward pass. Returns (final_input, probs) like the torch module."""
    B, M, Q = query.shape
    _, N, V = values.shape
    I = ori_input.shape[-1]

    # Number of batches folded into one grid step.
    TB = B if (batch_block is None or B % batch_block != 0) else batch_block
    rows_blk = TB * M
    I_pad = _round_up(I, LANE)
    N_pad = _round_up(N, LANE)

    # Fuse gate_fc + concat_fc into one (I+V, 2I) projection, split by input part.
    w_big = jnp.concatenate([params["gate_w_t"], params["concat_w_t"]], axis=1)
    w_x = w_big[:I]                                        # (I, 2I)
    w_c = w_big[I:]                                        # (V, 2I)
    b_big = jnp.concatenate([params["gate_b"],
                             params["concat_b"]]).reshape(1, 2 * I)

    # Batch folded into rows for the batch-independent matmuls.
    q2 = query.reshape(B * M, Q).astype(jnp.float32)
    x2 = ori_input.reshape(B * M, I).astype(jnp.float32)
    # TODO(synk): at scaled-up shapes on v6e/v7x, cast q2/x2/values/weights to
    # bf16 here (keep f32 accumulation + f32 softmax/sigmoid math) for the bf16 MXU.
    mask_valid = (attn_mask != 0.0).astype(jnp.float32).reshape(B, 1, N)

    grid = (B // TB,)
    grid_spec = pltpu.PrefetchScalarGridSpec(
        num_scalar_prefetch=0,
        grid=grid,
        in_specs=[
            pl.BlockSpec((rows_blk, Q), lambda b: (b, 0)),     # query (folded)
            pl.BlockSpec((TB, N, V), lambda b: (b, 0, 0)),     # values
            pl.BlockSpec((rows_blk, I), lambda b: (b, 0)),     # ori_input (folded)
            pl.BlockSpec((TB, 1, N), lambda b: (b, 0, 0)),     # valid mask
            pl.BlockSpec((Q, V), lambda b: (0, 0)),            # attn_vec
            pl.BlockSpec((I, 2 * I), lambda b: (0, 0)),        # fused W, x part
            pl.BlockSpec((V, 2 * I), lambda b: (0, 0)),        # fused W, C part
            pl.BlockSpec((1, 2 * I), lambda b: (0, 0)),        # fused bias
        ],
        out_specs=[
            pl.BlockSpec((rows_blk, I_pad), lambda b: (b, 0)),  # final (padded)
            pl.BlockSpec((rows_blk, N_pad), lambda b: (b, 0)),  # probs (padded)
        ],
    )

    out_shapes = (
        jax.ShapeDtypeStruct((B * M, I_pad), jnp.float32),
        jax.ShapeDtypeStruct((B * M, N_pad), jnp.float32),
    )

    final_pad, probs_pad = pl.pallas_call(
        gated_attn_kernel,
        out_shape=out_shapes,
        grid_spec=grid_spec,
        compiler_params=pltpu.CompilerParams(
            dimension_semantics=("parallel",)),
    )(q2, values.astype(jnp.float32), x2, mask_valid,
      params["attn_vec"], w_x, w_c, b_big)

    final = final_pad[:, :I].reshape(B, M, I)
    probs = probs_pad[:, :N].reshape(B, M, N)
    return final, probs


def init_params(key, query_size, value_size, input_size):
    """Deterministic xavier-normal style init matching the module shapes."""
    kv, kg, kgb, kc, kcb = jax.random.split(key, 5)

    def xavier(k, shape):
        fan_out, fan_in = shape[0], shape[1]
        std = (2.0 / (fan_in + fan_out)) ** 0.5
        return std * jax.random.normal(k, shape, dtype=jnp.float32)

    attn_vec = xavier(kv, (query_size, value_size))
    d_in = input_size + value_size
    gate_w = xavier(kg, (input_size, d_in))      # torch layout (out, in)
    concat_w = xavier(kc, (input_size, d_in))
    bound = 1.0 / (d_in ** 0.5)
    gate_b = jax.random.uniform(kgb, (input_size,), jnp.float32, -bound, bound)
    concat_b = jax.random.uniform(kcb, (input_size,), jnp.float32, -bound, bound)
    return {
        "attn_vec": attn_vec,
        "gate_w_t": gate_w.T,       # (I+V, I), for right-multiplication
        "gate_b": gate_b,
        "concat_w_t": concat_w.T,   # (I+V, I)
        "concat_b": concat_b,
    }


def _reference(query, values, ori_input, attn_mask, params):
    """Pure-JAX reference mirroring the PyTorch forward (eval mode)."""
    S = jnp.einsum("bmq,qv,bnv->bmn", query, params["attn_vec"], values)
    S = jnp.where(attn_mask[:, None, :] == 0.0, -jnp.inf, S)
    probs = jax.nn.softmax(S, axis=-1)
    probs = jnp.where(jnp.isnan(probs), 0.0, probs)
    C = jnp.einsum("bmn,bnv->bmv", probs, values)
    concat = jnp.concatenate([ori_input, C], axis=-1)
    gate = jax.nn.sigmoid(concat @ params["gate_w_t"] + params["gate_b"])
    cand = concat @ params["concat_w_t"] + params["concat_b"]
    final = gate * cand + (1.0 - gate) * ori_input
    return final, probs


if __name__ == "__main__":
    B, M, N = 4, 8, 8          # batch, max_sents, num_cpnet
    Q, V, I = 32, 32, 32       # query_size, value_size, input_size

    key = jax.random.PRNGKey(0)
    kq, kv, kx, kp = jax.random.split(key, 4)
    query = jax.random.normal(kq, (B, M, Q), dtype=jnp.float32)
    values = jax.random.normal(kv, (B, N, V), dtype=jnp.float32)
    ori_input = jax.random.normal(kx, (B, M, I), dtype=jnp.float32)
    # mask: 0 marks padded cpnet entries.
    # batch 1 partially padded, batch 3 fully padded (exercises isnan->0 path).
    attn_mask = jnp.ones((B, N), dtype=jnp.float32)
    attn_mask = attn_mask.at[1, N - 3:].set(0.0)
    attn_mask = attn_mask.at[3, :].set(0.0)

    params = init_params(kp, Q, V, I)

    final_out, probs_out = gated_attn_update(query, values, ori_input,
                                             attn_mask, params, batch_block=2)
    jax.block_until_ready((final_out, probs_out))

    ref_final, ref_probs = _reference(query, values, ori_input, attn_mask, params)
    # Tolerances account for the EUP approximate reciprocal in the softmax.
    assert jnp.allclose(probs_out, ref_probs, atol=2e-3, rtol=2e-3)
    assert jnp.allclose(final_out, ref_final, atol=5e-3, rtol=2e-3)

    print("KERNEL_OK")
</pallas_src>

<mosaic_0001>
module attributes {stable_mosaic.version = 11 : i64} {
  func.func @gated_attn_kernel(%arg0: i32, %arg1: memref<16x32xf32, #tpu.memory_space<vmem>>, %arg2: memref<2x8x32xf32, #tpu.memory_space<vmem>>, %arg3: memref<16x32xf32, #tpu.memory_space<vmem>>, %arg4: memref<2x1x8xf32, #tpu.memory_space<vmem>>, %arg5: memref<32x32xf32, #tpu.memory_space<vmem>>, %arg6: memref<32x64xf32, #tpu.memory_space<vmem>>, %arg7: memref<32x64xf32, #tpu.memory_space<vmem>>, %arg8: memref<1x64xf32, #tpu.memory_space<vmem>>, %arg9: memref<16x128xf32, #tpu.memory_space<vmem>>, %arg10: memref<16x128xf32, #tpu.memory_space<vmem>>) attributes {dimension_semantics = [#tpu.dimension_semantics<parallel>], iteration_bounds = array<i64: 2>, scalar_prefetch = 0 : i64, scratch_operands = 0 : i64, tpu.core_type = #tpu.core_type<tc>, window_params = [{transform_indices = @transform_0, window_bounds = array<i64: 16, 32>}, {transform_indices = @transform_1, window_bounds = array<i64: 2, 8, 32>}, {transform_indices = @transform_2, window_bounds = array<i64: 16, 32>}, {transform_indices = @transform_3, window_bounds = array<i64: 2, 1, 8>}, {pipeline_mode = #tpu.pipeline_mode<synchronous>, transform_indices = @transform_4, window_bounds = array<i64: 32, 32>}, {pipeline_mode = #tpu.pipeline_mode<synchronous>, transform_indices = @transform_5, window_bounds = array<i64: 32, 64>}, {pipeline_mode = #tpu.pipeline_mode<synchronous>, transform_indices = @transform_6, window_bounds = array<i64: 32, 64>}, {pipeline_mode = #tpu.pipeline_mode<synchronous>, transform_indices = @transform_7, window_bounds = array<i64: 1, 64>}, {transform_indices = @transform_8, window_bounds = array<i64: 16, 128>}, {transform_indices = @transform_9, window_bounds = array<i64: 16, 128>}]} {
    %c0 = arith.constant 0 : index
    %c0_0 = arith.constant 0 : index
    %0 = vector.load %arg1[%c0, %c0_0] : memref<16x32xf32, #tpu.memory_space<vmem>>, vector<16x32xf32>
    %c0_1 = arith.constant 0 : index
    %c0_2 = arith.constant 0 : index
    %1 = vector.load %arg3[%c0_1, %c0_2] : memref<16x32xf32, #tpu.memory_space<vmem>>, vector<16x32xf32>
    %c0_3 = arith.constant 0 : index
    %c0_4 = arith.constant 0 : index
    %c0_5 = arith.constant 0 : index
    %2 = vector.load %arg2[%c0_3, %c0_4, %c0_5] : memref<2x8x32xf32, #tpu.memory_space<vmem>>, vector<2x8x32xf32>
    %c0_6 = arith.constant 0 : index
    %c0_7 = arith.constant 0 : index
    %c0_8 = arith.constant 0 : index
    %3 = vector.load %arg4[%c0_6, %c0_7, %c0_8] : memref<2x1x8xf32, #tpu.memory_space<vmem>>, vector<2x1x8xf32>
    %c0_9 = arith.constant 0 : index
    %c0_10 = arith.constant 0 : index
    %4 = vector.load %arg5[%c0_9, %c0_10] : memref<32x32xf32, #tpu.memory_space<vmem>>, vector<32x32xf32>
    %cst = arith.constant dense<0.000000e+00> : vector<16x32xf32>
    %5 = tpu.matmul %0, %4, %cst {dimension_numbers = #tpu.dot_dimension_numbers<[1], [0], [0], [1], [0, 0, 1, 1], [], []>} : vector<16x32xf32>, vector<32x32xf32>, vector<16x32xf32> -> vector<16x32xf32>
    %6 = vector.shape_cast %5 : vector<16x32xf32> to vector<2x8x32xf32>
    "tpu.trace_start"() <{level = 10 : i32, message = "bmv,bnv->bmn"}> : () -> ()
    %cst_11 = arith.constant dense<0.000000e+00> : vector<2x8x8xf32>
    %7 = tpu.matmul %6, %2, %cst_11 {dimension_numbers = #tpu.dot_dimension_numbers<[2], [2], [1], [1], [0, 0, 0, 1, 1, 1], [0], [0]>} : vector<2x8x32xf32>, vector<2x8x32xf32>, vector<2x8x8xf32> -> vector<2x8x8xf32>
    "tpu.trace_stop"() : () -> ()
    %cst_12 = arith.constant 1.000000e+00 : f32
    %8 = vector.broadcast %cst_12 : f32 to vector<2x1x8xf32>
    %9 = arith.subf %3, %8 : vector<2x1x8xf32>
    %cst_13 = arith.constant 1.000000e+30 : f32
    %10 = vector.broadcast %cst_13 : f32 to vector<2x1x8xf32>
    %11 = arith.mulf %9, %10 : vector<2x1x8xf32>
    %12 = vector.broadcast %11 : vector<2x1x8xf32> to vector<2x8x8xf32>
    %13 = arith.addf %7, %12 : vector<2x8x8xf32>
    %cst_14 = arith.constant dense<0xFF800000> : vector<2x8xf32>
    %14 = vector.multi_reduction <maximumf>, %13, %cst_14 [2] : vector<2x8x8xf32> to vector<2x8xf32>
    %15 = vector.shape_cast %14 : vector<2x8xf32> to vector<2x8x1xf32>
    %16 = vector.broadcast %15 : vector<2x8x1xf32> to vector<2x8x8xf32>
    %17 = arith.subf %13, %16 : vector<2x8x8xf32>
    %18 = math.exp %17 : vector<2x8x8xf32>
    %cst_15 = arith.constant dense<0.000000e+00> : vector<2x8xf32>
    %19 = vector.multi_reduction <add>, %18, %cst_15 [2] : vector<2x8x8xf32> to vector<2x8xf32>
    %20 = vector.shape_cast %19 : vector<2x8xf32> to vector<2x8x1xf32>
    %21 = tpu.reciprocal %20 {approx = true} : vector<2x8x1xf32> -> vector<2x8x1xf32>
    %22 = vector.broadcast %21 : vector<2x8x1xf32> to vector<2x8x8xf32>
    %23 = arith.mulf %18, %22 : vector<2x8x8xf32>
    %24 = vector.broadcast %3 : vector<2x1x8xf32> to vector<2x8x8xf32>
    %25 = arith.mulf %23, %24 : vector<2x8x8xf32>
    "tpu.trace_start"() <{level = 10 : i32, message = "bmn,bnv->bmv"}> : () -> ()
    %cst_16 = arith.constant dense<0.000000e+00> : vector<2x8x32xf32>
    %26 = tpu.matmul %25, %2, %cst_16 {dimension_numbers = #tpu.dot_dimension_numbers<[2], [1], [1], [2], [0, 0, 0, 1, 1, 2], [0], [0]>} : vector<2x8x8xf32>, vector<2x8x32xf32>, vector<2x8x32xf32> -> vector<2x8x32xf32>
    "tpu.trace_stop"() : () -> ()
    %27 = vector.shape_cast %26 : vector<2x8x32xf32> to vector<16x32xf32>
    %c0_17 = arith.constant 0 : index
    %c0_18 = arith.constant 0 : index
    %28 = vector.load %arg6[%c0_17, %c0_18] : memref<32x64xf32, #tpu.memory_space<vmem>>, vector<32x64xf32>
    %cst_19 = arith.constant dense<0.000000e+00> : vector<16x64xf32>
    %29 = tpu.matmul %1, %28, %cst_19 {dimension_numbers = #tpu.dot_dimension_numbers<[1], [0], [0], [1], [0, 0, 1, 1], [], []>} : vector<16x32xf32>, vector<32x64xf32>, vector<16x64xf32> -> vector<16x64xf32>
    %c0_20 = arith.constant 0 : index
    %c0_21 = arith.constant 0 : index
    %30 = vector.load %arg7[%c0_20, %c0_21] : memref<32x64xf32, #tpu.memory_space<vmem>>, vector<32x64xf32>
    %cst_22 = arith.constant dense<0.000000e+00> : vector<16x64xf32>
    %31 = tpu.matmul %27, %30, %cst_22 {dimension_numbers = #tpu.dot_dimension_numbers<[1], [0], [0], [1], [0, 0, 1, 1], [], []>} : vector<16x32xf32>, vector<32x64xf32>, vector<16x64xf32> -> vector<16x64xf32>
    %32 = arith.addf %29, %31 : vector<16x64xf32>
    %c0_23 = arith.constant 0 : index
    %c0_24 = arith.constant 0 : index
    %33 = vector.load %arg8[%c0_23, %c0_24] : memref<1x64xf32, #tpu.memory_space<vmem>>, vector<1x64xf32>
    %34 = vector.broadcast %33 : vector<1x64xf32> to vector<16x64xf32>
    %35 = arith.addf %32, %34 : vector<16x64xf32>
    %36 = vector.extract_strided_slice %35 {offsets = [0, 0], sizes = [16, 32], strides = [1, 1]} : vector<16x64xf32> to vector<16x32xf32>
    %37 = arith.negf %36 : vector<16x32xf32>
    %38 = math.exp %37 : vector<16x32xf32>
    %cst_25 = arith.constant 1.000000e+00 : f32
    %39 = vector.broadcast %cst_25 : f32 to vector<16x32xf32>
    %40 = arith.addf %39, %38 : vector<16x32xf32>
    %41 = arith.divf %39, %40 : vector<16x32xf32>
    %42 = vector.extract_strided_slice %35 {offsets = [0, 32], sizes = [16, 32], strides = [1, 1]} : vector<16x64xf32> to vector<16x32xf32>
    %43 = arith.mulf %41, %42 : vector<16x32xf32>
    %cst_26 = arith.constant 1.000000e+00 : f32
    %44 = vector.broadcast %cst_26 : f32 to vector<16x32xf32>
    %45 = arith.subf %44, %41 : vector<16x32xf32>
    %46 = arith.mulf %45, %1 : vector<16x32xf32>
    %47 = arith.addf %43, %46 : vector<16x32xf32>
    %cst_27 = arith.constant 0.000000e+00 : f32
    %48 = vector.broadcast %cst_27 : f32 to vector<16x96xf32>
    %49 = tpu.concatenate %47, %48 in 1 : vector<16x32xf32>, vector<16x96xf32> -> vector<16x128xf32>
    %c0_28 = arith.constant 0 : index
    %c0_29 = arith.constant 0 : index
    %50 = vector.load %arg9[%c0_28, %c0_29] : memref<16x128xf32, #tpu.memory_space<vmem>>, vector<16x128xf32>
    tpu.vector_store %arg9[%c0_28, %c0_29], %49 {strides = array<i32>} : memref<16x128xf32, #tpu.memory_space<vmem>>, vector<16x128xf32>,
    %51 = vector.shape_cast %25 : vector<2x8x8xf32> to vector<16x8xf32>
    %cst_30 = arith.constant 0.000000e+00 : f32
    %52 = vector.broadcast %cst_30 : f32 to vector<16x120xf32>
    %53 = tpu.concatenate %51, %52 in 1 : vector<16x8xf32>, vector<16x120xf32> -> vector<16x128xf32>
    %c0_31 = arith.constant 0 : index
    %c0_32 = arith.constant 0 : index
    %54 = vector.load %arg10[%c0_31, %c0_32] : memref<16x128xf32, #tpu.memory_space<vmem>>, vector<16x128xf32>
    tpu.vector_store %arg10[%c0_31, %c0_32], %53 {strides = array<i32>} : memref<16x128xf32, #tpu.memory_space<vmem>>, vector<16x128xf32>,
    return
  }
  func.func @transform_0(%arg0: i32) -> (i32, i32) {
    %c0_i32 = arith.constant 0 : i32
    %c0_i32_0 = arith.constant 0 : i32
    return %arg0, %c0_i32 : i32, i32
  }
  func.func @transform_1(%arg0: i32) -> (i32, i32, i32) {
    %c0_i32 = arith.constant 0 : i32
    %c0_i32_0 = arith.constant 0 : i32
    %c0_i32_1 = arith.constant 0 : i32
    return %arg0, %c0_i32, %c0_i32_0 : i32, i32, i32
  }
  func.func @transform_2(%arg0: i32) -> (i32, i32) {
    %c0_i32 = arith.constant 0 : i32
    %c0_i32_0 = arith.constant 0 : i32
    return %arg0, %c0_i32 : i32, i32
  }
  func.func @transform_3(%arg0: i32) -> (i32, i32, i32) {
    %c0_i32 = arith.constant 0 : i32
    %c0_i32_0 = arith.constant 0 : i32
    %c0_i32_1 = arith.constant 0 : i32
    return %arg0, %c0_i32, %c0_i32_0 : i32, i32, i32
  }
  func.func @transform_4(%arg0: i32) -> (i32, i32) {
    %c0_i32 = arith.constant 0 : i32
    %c0_i32_0 = arith.constant 0 : i32
    %c0_i32_1 = arith.constant 0 : i32
    return %c0_i32, %c0_i32_0 : i32, i32
  }
  func.func @transform_5(%arg0: i32) -> (i32, i32) {
    %c0_i32 = arith.constant 0 : i32
    %c0_i32_0 = arith.constant 0 : i32
    %c0_i32_1 = arith.constant 0 : i32
    return %c0_i32, %c0_i32_0 : i32, i32
  }
  func.func @transform_6(%arg0: i32) -> (i32, i32) {
    %c0_i32 = arith.constant 0 : i32
    %c0_i32_0 = arith.constant 0 : i32
    %c0_i32_1 = arith.constant 0 : i32
    return %c0_i32, %c0_i32_0 : i32, i32
  }
  func.func @transform_7(%arg0: i32) -> (i32, i32) {
    %c0_i32 = arith.constant 0 : i32
    %c0_i32_0 = arith.constant 0 : i32
    %c0_i32_1 = arith.constant 0 : i32
    return %c0_i32, %c0_i32_0 : i32, i32
  }
  func.func @transform_8(%arg0: i32) -> (i32, i32) {
    %c0_i32 = arith.constant 0 : i32
    %c0_i32_0 = arith.constant 0 : i32
    return %arg0, %c0_i32 : i32, i32
  }
  func.func @transform_9(%arg0: i32) -> (i32, i32) {
    %c0_i32 = arith.constant 0 : i32
    %c0_i32_0 = arith.constant 0 : i32
    return %arg0, %c0_i32 : i32, i32
  }
}

</mosaic_0001>

<llo_original>
// kernel: tpu_custom_call.1
$region0: #{tpu_custom_call.1}
  #allocation0 [shape = 'u32[]', space=smem, size = 0x4, offset = 0x4, fixed_abs, tag = 'smem constant byte address 0x4 - core index']
  #allocation1 [shape = 'u32[144,128]{1,0:T(1,128)}', space=vmem, size = 0x12000, scoped, tag = 'internal scratch']
  %s0 = inlined_call_operand.hbm [shape: f32[32,32], index: 0, kind: input, shape index: {}]
  %s1 = inlined_call_operand.hbm [shape: f32[4,8,32], index: 1, kind: input, shape index: {}]
  %s2 = inlined_call_operand.hbm [shape: f32[32,32], index: 2, kind: input, shape index: {}]
  %s3 = inlined_call_operand.vmem [shape: f32[4,1,8], index: 3, kind: input, shape index: {}]
  %s4 = inlined_call_operand.hbm [shape: f32[32,32], index: 4, kind: input, shape index: {}]
  %s5 = inlined_call_operand.hbm [shape: f32[32,64], index: 5, kind: input, shape index: {}]
  %s6 = inlined_call_operand.hbm [shape: f32[32,64], index: 6, kind: input, shape index: {}]
  %s7 = inlined_call_operand.vmem [shape: f32[1,64], index: 7, kind: input, shape index: {}]
  %s8 = inlined_call_operand.hbm [shape: f32[32,128], index: 8, kind: output, shape index: {0}]
  %s9 = inlined_call_operand.hbm [shape: f32[32,128], index: 9, kind: output, shape index: {1}]
  %10 = xla_tuple %s8, %s9
  %s11 = sld [smem:[#allocation0]]
  $region97: #{tpu_custom_call.1} parent=0
    _
  %s13 = ssub.s32 1, %s11
  %s14 = scalar_select 0, %s13, %s11
  $region1: #{tpu_custom_call.1} parent=0
    #allocation2 [shape = 'u8[16384]{0}', space=vmem, size = 0x4000, scoped, tag = 'input window, operand 0']
    #allocation3 [shape = 's32[2]{0}', space=sflag, size = 0x8, scoped, tag = 'scoped memory for tpu_custom_call.1']
    #allocation4 [shape = 's32[2]{0}', space=sflag, size = 0x8, scoped, tag = 'scoped memory for tpu_custom_call.1']
    #allocation5 [shape = 'u8[16384]{0}', space=vmem, size = 0x4000, scoped, tag = 'input window, operand 1']
    #allocation6 [shape = 's32[2]{0}', space=sflag, size = 0x8, scoped, tag = 'scoped memory for tpu_custom_call.1']
    #allocation7 [shape = 'u8[16384]{0}', space=vmem, size = 0x4000, scoped, tag = 'input window, operand 2']
    #allocation8 [shape = 'u8[16384]{0}', space=vmem, size = 0x4000, scoped, tag = 'input window, operand 4, single buffered']
    #allocation9 [shape = 's32[1]{0}', space=sflag, size = 0x4, scoped, tag = 'scoped memory for tpu_custom_call.1']
    #allocation10 [shape = 'u8[16384]{0}', space=vmem, size = 0x4000, scoped, tag = 'input window, operand 5, single buffered']
    #allocation11 [shape = 'u8[16384]{0}', space=vmem, size = 0x4000, scoped, tag = 'input window, operand 6, single buffered']
    #allocation12 [shape = 's32[1]{0}', space=sflag, size = 0x4, scoped, tag = 'scoped memory for tpu_custom_call.1']
    #allocation13 [shape = 'u8[16384]{0}', space=vmem, size = 0x4000, scoped, tag = 'output window, operand 0']
    #allocation14 [shape = 'u8[16384]{0}', space=vmem, size = 0x4000, scoped, tag = 'output window, operand 1']
    #allocation15 [shape = 's32[2]{0}', space=sflag, size = 0x8, scoped, tag = 'scoped memory for tpu_custom_call.1']
    %15 = vsyncpa [#allocation3], 0
    %s16 = scalar_lea.sflag [#allocation3], 1
    %17 = vsyncpa %s16, 0
    %18 = vsyncpa [#allocation6], 0
    %s19 = scalar_lea.sflag [#allocation6], 1
    %20 = vsyncpa %s19, 0
    %21 = vsyncpa [#allocation9], 0
    %22 = vsyncpa [#allocation12], 0
    %23 = vsyncpa [#allocation4], 0
    %s24 = scalar_lea.sflag [#allocation4], 1
    %25 = vsyncpa %s24, 0
    %26 = vsyncpa [#allocation15], 0
    %s27 = scalar_lea.sflag [#allocation15], 1
    %28 = vsyncpa %s27, 0
    loop: start=0, step=1, limit=4
    $region2: #{tpu_custom_call.1} parent=1 // loop_pre_header
      _
    $region3: #{tpu_custom_call.1} parent=1 // loop_header
      %s30 = sphi 0, %s34
      %p31 = scmp.ge.s32.totalorder %s30, 4
      %s40 = sphi 0, %s42
      %s43 = sphi 0, %s40
      %s44 = sphi 0, %s43
      %s60 = sphi 0, %s44
      %s66 = sphi 0, %s68
      %s69 = sphi 0, %s66
      %s70 = sphi 0, %s69
      %s86 = sphi 0, %s70
      %s92 = sphi 0, %s94
      %s95 = sphi 0, %s92
      %s96 = sphi 0, %s95
      %s112 = sphi 0, %s96
      %s118 = sphi 0, %s120
      %s121 = sphi 0, %s118
      %s122 = sphi 0, %s121
      %s138 = sphi 0, %s122
      %s142 = sphi 0, %s142
      %s144 = sphi 0, %s142
      %s145 = sphi 0, %s144
      %s159 = sphi 0, %s145
      %s163 = sphi 0, %s163
      %s165 = sphi 0, %s163
      %s166 = sphi 0, %s165
      %s180 = sphi 0, %s166
      %s184 = sphi 0, %s184
      %s186 = sphi 0, %s184
      %s187 = sphi 0, %s186
      %s201 = sphi 0, %s187
      %s205 = sphi 0, %s205
      %s207 = sphi 0, %s205
      %s208 = sphi 0, %s207
      %s222 = sphi 0, %s208
      %s228 = sphi 0, %s230
      %s231 = sphi 0, %s228
      %s232 = sphi 0, %s231
      %s248 = sphi 0, %s232
      %s254 = sphi 0, %s256
      %s257 = sphi 0, %s254
      %s258 = sphi 0, %s257
      %s274 = sphi 0, %s258
    $region4: #{tpu_custom_call.1} parent=1 // loop_header_branch
      %33 = sbr.rel (%p31) target = $region8
    $region5: #{tpu_custom_call.1} parent=1 // loop_body
      %s35 = ssub.s32 %s30, 1
      %s36 = ssub.s32 %s30, 2
      %s37 = sadd.s32 %s30, 1
      %s38 = ssub.s32 %s30, %s37
      %p39 = scmp.eq.s32.totalorder %s38, 0
      %s41 = sadd.s32 %s40, 1
      %s42 = scalar_select %p39, %s40, %s41
      %p45 = pneg %p39
      %p46 = scmp.eq.s32.totalorder %s30, 1
      %p47 = por %p45, %p46
      %p48 = scmp.ne.s32.totalorder %s40, %s43
      %p49 = scmp.eq.s32.totalorder %s30, 0
      %p50 = por %p48, %p49
      %p51 = scmp.ne.s32.totalorder %s40, %s43
      %p52 = scmp.eq.s32.totalorder %s35, 1
      %p53 = por %p51, %p52
      %p54 = scmp.ne.s32.totalorder %s43, %s44
      %p55 = scmp.eq.s32.totalorder %s35, 0
      %p56 = por %p54, %p55
      %p57 = scmp.ne.s32.totalorder %s43, %s44
      %p58 = scmp.eq.s32.totalorder %s36, 1
      %p59 = por %p57, %p58
      %p61 = scmp.ne.s32.totalorder %s44, %s60
      %p62 = scmp.eq.s32.totalorder %s36, 0
      %p63 = por %p61, %p62
      %s64 = ssub.s32 %s30, %s37
      %p65 = scmp.eq.s32.totalorder %s64, 0
      %s67 = sadd.s32 %s66, 1
      %s68 = scalar_select %p65, %s66, %s67
      %p71 = pneg %p65
      %p72 = scmp.eq.s32.totalorder %s30, 1
      %p73 = por %p71, %p72
      %p74 = scmp.ne.s32.totalorder %s66, %s69
      %p75 = scmp.eq.s32.totalorder %s30, 0
      %p76 = por %p74, %p75
      %p77 = scmp.ne.s32.totalorder %s66, %s69
      %p78 = scmp.eq.s32.totalorder %s35, 1
      %p79 = por %p77, %p78
      %p80 = scmp.ne.s32.totalorder %s69, %s70
      %p81 = scmp.eq.s32.totalorder %s35, 0
      %p82 = por %p80, %p81
      %p83 = scmp.ne.s32.totalorder %s69, %s70
      %p84 = scmp.eq.s32.totalorder %s36, 1
      %p85 = por %p83, %p84
      %p87 = scmp.ne.s32.totalorder %s70, %s86
      %p88 = scmp.eq.s32.totalorder %s36, 0
      %p89 = por %p87, %p88
      %s90 = ssub.s32 %s30, %s37
      %p91 = scmp.eq.s32.totalorder %s90, 0
      %s93 = sadd.s32 %s92, 1
      %s94 = scalar_select %p91, %s92, %s93
      %p97 = pneg %p91
      %p98 = scmp.eq.s32.totalorder %s30, 1
      %p99 = por %p97, %p98
      %p100 = scmp.ne.s32.totalorder %s92, %s95
      %p101 = scmp.eq.s32.totalorder %s30, 0
      %p102 = por %p100, %p101
      %p103 = scmp.ne.s32.totalorder %s92, %s95
      %p104 = scmp.eq.s32.totalorder %s35, 1
      %p105 = por %p103, %p104
      %p106 = scmp.ne.s32.totalorder %s95, %s96
      %p107 = scmp.eq.s32.totalorder %s35, 0
      %p108 = por %p106, %p107
      %p109 = scmp.ne.s32.totalorder %s95, %s96
      %p110 = scmp.eq.s32.totalorder %s36, 1
      %p111 = por %p109, %p110
      %p113 = scmp.ne.s32.totalorder %s96, %s112
      %p114 = scmp.eq.s32.totalorder %s36, 0
      %p115 = por %p113, %p114
      %s116 = ssub.s32 %s30, %s37
      %p117 = scmp.eq.s32.totalorder %s116, 0
      %s119 = sadd.s32 %s118, 1
      %s120 = scalar_select %p117, %s118, %s119
      %p123 = pneg %p117
      %p124 = scmp.eq.s32.totalorder %s30, 1
      %p125 = por %p123, %p124
      %p126 = scmp.ne.s32.totalorder %s118, %s121
      %p127 = scmp.eq.s32.totalorder %s30, 0
      %p128 = por %p126, %p127
      %p129 = scmp.ne.s32.totalorder %s118, %s121
      %p130 = scmp.eq.s32.totalorder %s35, 1
      %p131 = por %p129, %p130
      %p132 = scmp.ne.s32.totalorder %s121, %s122
      %p133 = scmp.eq.s32.totalorder %s35, 0
      %p134 = por %p132, %p133
      %p135 = scmp.ne.s32.totalorder %s121, %s122
      %p136 = scmp.eq.s32.totalorder %s36, 1
      %p137 = por %p135, %p136
      %p139 = scmp.ne.s32.totalorder %s122, %s138
      %p140 = scmp.eq.s32.totalorder %s36, 0
      %p141 = por %p139, %p140
      %s143 = sadd.s32 %s142, 1
      %p146 = scmp.eq.s32.totalorder %s30, 1
      %p147 = scmp.ne.s32.totalorder %s142, %s144
      %p148 = scmp.eq.s32.totalorder %s30, 0
      %p149 = por %p147, %p148
      %p150 = scmp.ne.s32.totalorder %s142, %s144
      %p151 = scmp.eq.s32.totalorder %s35, 1
      %p152 = por %p150, %p151
      %p153 = scmp.ne.s32.totalorder %s144, %s145
      %p154 = scmp.eq.s32.totalorder %s35, 0
      %p155 = por %p153, %p154
      %p156 = scmp.ne.s32.totalorder %s144, %s145
      %p157 = scmp.eq.s32.totalorder %s36, 1
      %p158 = por %p156, %p157
      %p160 = scmp.ne.s32.totalorder %s145, %s159
      %p161 = scmp.eq.s32.totalorder %s36, 0
      %p162 = por %p160, %p161
      %s164 = sadd.s32 %s163, 1
      %p167 = scmp.eq.s32.totalorder %s30, 1
      %p168 = scmp.ne.s32.totalorder %s163, %s165
      %p169 = scmp.eq.s32.totalorder %s30, 0
      %p170 = por %p168, %p169
      %p171 = scmp.ne.s32.totalorder %s163, %s165
      %p172 = scmp.eq.s32.totalorder %s35, 1
      %p173 = por %p171, %p172
      %p174 = scmp.ne.s32.totalorder %s165, %s166
      %p175 = scmp.eq.s32.totalorder %s35, 0
      %p176 = por %p174, %p175
      %p177 = scmp.ne.s32.totalorder %s165, %s166
      %p178 = scmp.eq.s32.totalorder %s36, 1
      %p179 = por %p177, %p178
      %p181 = scmp.ne.s32.totalorder %s166, %s180
      %p182 = scmp.eq.s32.totalorder %s36, 0
      %p183 = por %p181, %p182
      %s185 = sadd.s32 %s184, 1
      %p188 = scmp.eq.s32.totalorder %s30, 1
      %p189 = scmp.ne.s32.totalorder %s184, %s186
      %p190 = scmp.eq.s32.totalorder %s30, 0
      %p191 = por %p189, %p190
      %p192 = scmp.ne.s32.totalorder %s184, %s186
      %p193 = scmp.eq.s32.totalorder %s35, 1
      %p194 = por %p192, %p193
      %p195 = scmp.ne.s32.totalorder %s186, %s187
      %p196 = scmp.eq.s32.totalorder %s35, 0
      %p197 = por %p195, %p196
      %p198 = scmp.ne.s32.totalorder %s186, %s187
      %p199 = scmp.eq.s32.totalorder %s36, 1
      %p200 = por %p198, %p199
      %p202 = scmp.ne.s32.totalorder %s187, %s201
      %p203 = scmp.eq.s32.totalorder %s36, 0
      %p204 = por %p202, %p203
      %s206 = sadd.s32 %s205, 1
      %p209 = scmp.eq.s32.totalorder %s30, 1
      %p210 = scmp.ne.s32.totalorder %s205, %s207
      %p211 = scmp.eq.s32.totalorder %s30, 0
      %p212 = por %p210, %p211
      %p213 = scmp.ne.s32.totalorder %s205, %s207
      %p214 = scmp.eq.s32.totalorder %s35, 1
      %p215 = por %p213, %p214
      %p216 = scmp.ne.s32.totalorder %s207, %s208
      %p217 = scmp.eq.s32.totalorder %s35, 0
      %p218 = por %p216, %p217
      %p219 = scmp.ne.s32.totalorder %s207, %s208
      %p220 = scmp.eq.s32.totalorder %s36, 1
      %p221 = por %p219, %p220
      %p223 = scmp.ne.s32.totalorder %s208, %s222
      %p224 = scmp.eq.s32.totalorder %s36, 0
      %p225 = por %p223, %p224
      %s226 = ssub.s32 %s30, %s37
      %p227 = scmp.eq.s32.totalorder %s226, 0
      %s229 = sadd.s32 %s228, 1
      %s230 = scalar_select %p227, %s228, %s229
      %p233 = pneg %p227
      %p234 = scmp.eq.s32.totalorder %s30, 1
      %p235 = por %p233, %p234
      %p236 = scmp.ne.s32.totalorder %s228, %s231
      %p237 = scmp.eq.s32.totalorder %s30, 0
      %p238 = por %p236, %p237
      %p239 = scmp.ne.s32.totalorder %s228, %s231
      %p240 = scmp.eq.s32.totalorder %s35, 1
      %p241 = por %p239, %p240
      %p242 = scmp.ne.s32.totalorder %s231, %s232
      %p243 = scmp.eq.s32.totalorder %s35, 0
      %p244 = por %p242, %p243
      %p245 = scmp.ne.s32.totalorder %s231, %s232
      %p246 = scmp.eq.s32.totalorder %s36, 1
      %p247 = por %p245, %p246
      %p249 = scmp.ne.s32.totalorder %s232, %s248
      %p250 = scmp.eq.s32.totalorder %s36, 0
      %p251 = por %p249, %p250
      %s252 = ssub.s32 %s30, %s37
      %p253 = scmp.eq.s32.totalorder %s252, 0
      %s255 = sadd.s32 %s254, 1
      %s256 = scalar_select %p253, %s254, %s255
      %p259 = pneg %p253
      %p260 = scmp.eq.s32.totalorder %s30, 1
      %p261 = por %p259, %p260
      %p262 = scmp.ne.s32.totalorder %s254, %s257
      %p263 = scmp.eq.s32.totalorder %s30, 0
      %p264 = por %p262, %p263
      %p265 = scmp.ne.s32.totalorder %s254, %s257
      %p266 = scmp.eq.s32.totalorder %s35, 1
      %p267 = por %p265, %p266
      %p268 = scmp.ne.s32.totalorder %s257, %s258
      %p269 = scmp.eq.s32.totalorder %s35, 0
      %p270 = por %p268, %p269
      %p271 = scmp.ne.s32.totalorder %s257, %s258
      %p272 = scmp.eq.s32.totalorder %s36, 1
      %p273 = por %p271, %p272
      %p275 = scmp.ne.s32.totalorder %s258, %s274
      %p276 = scmp.eq.s32.totalorder %s36, 0
      %p277 = por %p275, %p276
      %p278 = scmp.le.s32.totalorder 1, %s30
      %p279 = scmp.lt.s32.totalorder %s30, 3
      %p280 = pnand %p278, %p279
      %p281 = pneg %p280
      // Predicated region
      $region9: #{tpu_custom_call.1} parent=5 // pred_check
        _
      $region10: #{tpu_custom_call.1} parent=5 // pred_check_branch
        %283 = sbr.rel (%p280) target = $region12
      $region11: #{tpu_custom_call.1} parent=5 // pred_region
        %s284 = ssub.s32 %s30, 1
        // Predicated region
        $region13: #{tpu_custom_call.1} parent=11 // pred_check
          %p285 = pneg %p155
        $region14: #{tpu_custom_call.1} parent=11 // pred_check_branch
          %287 = sbr.rel (%p285) target = $region16
        $region15: #{tpu_custom_call.1} parent=11 // pred_region
          %s289 = ssub.s32 512, 512
          %290 = vsyncadd [#allocation9], %s289
          %s291 = sshll.u32 [#allocation8], 4
          %s292 = int_to_ptr.vmem [resolvable:$true] %s291
          %297 = dma.hbm_to_vmem [thread:$0]  %s4, 512, %s292, [#allocation9], 128, 128, 8
        $region16: #{tpu_custom_call.1} parent=11 // pred_fallthru
          _
        // Predicated region
        $region17: #{tpu_custom_call.1} parent=11 // pred_check
          %p298 = pneg %p176
        $region18: #{tpu_custom_call.1} parent=11 // pred_check_branch
          %300 = sbr.rel (%p298) target = $region20
        $region19: #{tpu_custom_call.1} parent=11 // pred_region
          %s302 = ssub.s32 512, 512
          %303 = vsyncadd [#allocation9], %s302
          %s304 = sshll.u32 [#allocation10], 4
          %s305 = int_to_ptr.vmem [resolvable:$true] %s304
          %310 = dma.hbm_to_vmem [thread:$0]  %s5, 512, %s305, [#allocation9], 128, 128, 8
        $region20: #{tpu_custom_call.1} parent=11 // pred_fallthru
          _
        // Predicated region
        $region21: #{tpu_custom_call.1} parent=11 // pred_check
          %p311 = pneg %p197
        $region22: #{tpu_custom_call.1} parent=11 // pred_check_branch
          %313 = sbr.rel (%p311) target = $region24
        $region23: #{tpu_custom_call.1} parent=11 // pred_region
          %s315 = ssub.s32 512, 512
          %316 = vsyncadd [#allocation12], %s315
          %s317 = sshll.u32 [#allocation11], 4
          %s318 = int_to_ptr.vmem [resolvable:$true] %s317
          %323 = dma.hbm_to_vmem [thread:$0]  %s6, 512, %s318, [#allocation12], 128, 128, 8
        $region24: #{tpu_custom_call.1} parent=11 // pred_fallthru
          _
        // Predicated region
        $region25: #{tpu_custom_call.1} parent=11 // pred_check
          %p324 = pneg %p218
        $region26: #{tpu_custom_call.1} parent=11 // pred_check_branch
          %326 = sbr.rel (%p324) target = $region28
        $region27: #{tpu_custom_call.1} parent=11 // pred_region
          _
        $region28: #{tpu_custom_call.1} parent=11 // pred_fallthru
          _
      $region12: #{tpu_custom_call.1} parent=5 // pred_fallthru
        _
      %p327 = scmp.lt.s32.totalorder %s30, 2
      // Predicated region
      $region29: #{tpu_custom_call.1} parent=5 // pred_check
        %p328 = pneg %p327
      $region30: #{tpu_custom_call.1} parent=5 // pred_check_branch
        %330 = sbr.rel (%p328) target = $region32
      $region31: #{tpu_custom_call.1} parent=5 // pred_region
        // Predicated region
        $region33: #{tpu_custom_call.1} parent=31 // pred_check
          %p331 = pneg %p50
        $region34: #{tpu_custom_call.1} parent=31 // pred_check_branch
          %333 = sbr.rel (%p331) target = $region36
        $region35: #{tpu_custom_call.1} parent=31 // pred_region
          %s334 = sand.u32 %s40, 1
          %s335 = scalar_lea.sflag [#allocation3], %s334
          %s336 = sand.u32 %s40, 1
          %s337 = smul.addr %s336, 16
          %s338 = scalar_lea.vmem [#allocation2], %s337
          %s339 = smul.u32 2, %s30
          %s341 = ssub.s32 256, 256
          %342 = vsyncadd %s335, %s341
          %s343 = smul.addr %s339, 128
          %s344 = scalar_lea.hbm %s0, %s343
          %s345 = sshll.u32 %s338, 4
          %s346 = int_to_ptr.vmem [resolvable:$true] %s345
          %351 = dma.hbm_to_vmem [thread:$0]  %s344, 256, %s346, %s335, 128, 128, 8
        $region36: #{tpu_custom_call.1} parent=31 // pred_fallthru
          _
        // Predicated region
        $region37: #{tpu_custom_call.1} parent=31 // pred_check
          %p352 = pneg %p76
        $region38: #{tpu_custom_call.1} parent=31 // pred_check_branch
          %354 = sbr.rel (%p352) target = $region40
        $region39: #{tpu_custom_call.1} parent=31 // pred_region
          %s355 = sand.u32 %s30, 1
          %s356 = scalar_lea.sflag [#allocation6], %s355
          %s357 = sand.u32 %s66, 1
          %s358 = smul.addr %s357, 16
          %s359 = scalar_lea.vmem [#allocation5], %s358
          %s360 = smul.u32 2, %s30
          %s362 = ssub.s32 256, 256
          %363 = vsyncadd %s356, %s362
          %s364 = smul.addr %s360, 128
          %s365 = scalar_lea.hbm %s1, %s364
          %s366 = sshll.u32 %s359, 4
          %s367 = int_to_ptr.vmem [resolvable:$true] %s366
          %372 = dma.hbm_to_vmem [thread:$0]  %s365, 256, %s367, %s356, 128, 128, 8
        $region40: #{tpu_custom_call.1} parent=31 // pred_fallthru
          _
        // Predicated region
        $region41: #{tpu_custom_call.1} parent=31 // pred_check
          %p373 = pneg %p102
        $region42: #{tpu_custom_call.1} parent=31 // pred_check_branch
          %375 = sbr.rel (%p373) target = $region44
        $region43: #{tpu_custom_call.1} parent=31 // pred_region
          %s376 = sand.u32 %s30, 1
          %s377 = scalar_lea.sflag [#allocation6], %s376
          %s378 = sand.u32 %s92, 1
          %s379 = smul.addr %s378, 16
          %s380 = scalar_lea.vmem [#allocation7], %s379
          %s381 = smul.u32 2, %s30
          %s383 = ssub.s32 256, 256
          %384 = vsyncadd %s377, %s383
          %s385 = smul.addr %s381, 128
          %s386 = scalar_lea.hbm %s2, %s385
          %s387 = sshll.u32 %s380, 4
          %s388 = int_to_ptr.vmem [resolvable:$true] %s387
          %393 = dma.hbm_to_vmem [thread:$0]  %s386, 256, %s388, %s377, 128, 128, 8
        $region44: #{tpu_custom_call.1} parent=31 // pred_fallthru
          _
        // Predicated region
        $region45: #{tpu_custom_call.1} parent=31 // pred_check
          %p394 = pneg %p128
        $region46: #{tpu_custom_call.1} parent=31 // pred_check_branch
          %396 = sbr.rel (%p394) target = $region48
        $region47: #{tpu_custom_call.1} parent=31 // pred_region
          %s397 = smul.u32 2, %s30
          %p398 = scmp.lt.s32.totalorder %s397, 3
          %s399 = scalar_select %p398, %s397, 3
          %s400 = scalar_lea.vmem %s3, %s399
          %s401 = smul.u32 2, %s30
        $region48: #{tpu_custom_call.1} parent=31 // pred_fallthru
          _
      $region32: #{tpu_custom_call.1} parent=5 // pred_fallthru
        _
      %p402 = scmp.le.s32.totalorder 1, %s30
      %p403 = scmp.lt.s32.totalorder %s30, 3
      %p404 = pnand %p402, %p403
      %p405 = pneg %p404
      // Predicated region
      $region49: #{tpu_custom_call.1} parent=5 // pred_check
        _
      $region50: #{tpu_custom_call.1} parent=5 // pred_check_branch
        %407 = sbr.rel (%p404) target = $region52
      $region51: #{tpu_custom_call.1} parent=5 // pred_region
        %s408 = ssub.s32 %s30, 1
        %s409 = sand.u32 %s43, 1
        %s410 = scalar_lea.sflag [#allocation3], %s409
        %s411 = sand.u32 %s43, 1
        %s412 = smul.addr %s411, 16
        %s413 = scalar_lea.vmem [#allocation2], %s412
        // Predicated region
        $region53: #{tpu_custom_call.1} parent=51 // pred_check
          %p414 = pneg %p56
        $region54: #{tpu_custom_call.1} parent=51 // pred_check_branch
          %416 = sbr.rel (%p414) target = $region56
        $region55: #{tpu_custom_call.1} parent=51 // pred_region
          %417 = dma.done %s410, 256
        $region56: #{tpu_custom_call.1} parent=51 // pred_fallthru
          _
        %s418 = sand.u32 %s35, 1
        %s419 = scalar_lea.sflag [#allocation6], %s418
        %s420 = sand.u32 %s69, 1
        %s421 = smul.addr %s420, 16
        %s422 = scalar_lea.vmem [#allocation5], %s421
        // Predicated region
        $region57: #{tpu_custom_call.1} parent=51 // pred_check
          %p423 = pneg %p82
        $region58: #{tpu_custom_call.1} parent=51 // pred_check_branch
          %425 = sbr.rel (%p423) target = $region60
        $region59: #{tpu_custom_call.1} parent=51 // pred_region
          %426 = dma.done %s419, 256
        $region60: #{tpu_custom_call.1} parent=51 // pred_fallthru
          _
        %s427 = sand.u32 %s35, 1
        %s428 = scalar_lea.sflag [#allocation6], %s427
        %s429 = sand.u32 %s95, 1
        %s430 = smul.addr %s429, 16
        %s431 = scalar_lea.vmem [#allocation7], %s430
        // Predicated region
        $region61: #{tpu_custom_call.1} parent=51 // pred_check
          %p432 = pneg %p108
        $region62: #{tpu_custom_call.1} parent=51 // pred_check_branch
          %434 = sbr.rel (%p432) target = $region64
        $region63: #{tpu_custom_call.1} parent=51 // pred_region
          %435 = dma.done %s428, 256
        $region64: #{tpu_custom_call.1} parent=51 // pred_fallthru
          _
        // Predicated region
        $region65: #{tpu_custom_call.1} parent=51 // pred_check
          %p436 = pneg %p155
        $region66: #{tpu_custom_call.1} parent=51 // pred_check_branch
          %438 = sbr.rel (%p436) target = $region68
        $region67: #{tpu_custom_call.1} parent=51 // pred_region
          %439 = dma.done [#allocation9], 512
        $region68: #{tpu_custom_call.1} parent=51 // pred_fallthru
          _
        // Predicated region
        $region69: #{tpu_custom_call.1} parent=51 // pred_check
          %p440 = pneg %p176
        $region70: #{tpu_custom_call.1} parent=51 // pred_check_branch
          %442 = sbr.rel (%p440) target = $region72
        $region71: #{tpu_custom_call.1} parent=51 // pred_region
          %443 = dma.done [#allocation9], 512
        $region72: #{tpu_custom_call.1} parent=51 // pred_fallthru
          _
        // Predicated region
        $region73: #{tpu_custom_call.1} parent=51 // pred_check
          %p444 = pneg %p197
        $region74: #{tpu_custom_call.1} parent=51 // pred_check_branch
          %446 = sbr.rel (%p444) target = $region76
        $region75: #{tpu_custom_call.1} parent=51 // pred_region
          %447 = dma.done [#allocation12], 512
        $region76: #{tpu_custom_call.1} parent=51 // pred_fallthru
          _
        %s448 = sand.u32 %s43, 1
        %s449 = scalar_lea.sflag [#allocation3], %s448
        %s450 = sand.u32 %s43, 1
        %s451 = smul.addr %s450, 16
        %s452 = scalar_lea.vmem [#allocation2], %s451
        %p453 = pneg %p56
        %p454 = pneg %p53
        %s455 = sand.u32 %s35, 1
        %s456 = scalar_lea.sflag [#allocation6], %s455
        %s457 = sand.u32 %s69, 1
        %s458 = smul.addr %s457, 16
        %s459 = scalar_lea.vmem [#allocation5], %s458
        %p460 = pneg %p82
        %p461 = pneg %p79
        %s462 = sand.u32 %s35, 1
        %s463 = scalar_lea.sflag [#allocation6], %s462
        %s464 = sand.u32 %s95, 1
        %s465 = smul.addr %s464, 16
        %s466 = scalar_lea.vmem [#allocation7], %s465
        %p467 = pneg %p108
        %p468 = pneg %p105
        %s469 = smul.u32 2, %s35
        %p470 = scmp.lt.s32.totalorder %s469, 3
        %s471 = scalar_select %p470, %s469, 3
        %s472 = scalar_lea.vmem %s3, %s471
        %p473 = pneg %p134
        %p474 = pneg %p131
        %p475 = pneg %p155
        %p476 = pneg %p152
        %p477 = pneg %p176
        %p478 = pneg %p173
        %p479 = pneg %p197
        %p480 = pneg %p194
        %p481 = pneg %p218
        %p482 = pneg %p215
        %p483 = pneg %p244
        %p484 = pneg %p241
        %s485 = sand.u32 %s231, 1
        %s486 = scalar_lea.sflag [#allocation4], %s485
        %s487 = sand.u32 %s231, 1
        %s488 = smul.addr %s487, 16
        %s489 = scalar_lea.vmem [#allocation13], %s488
        %p490 = pneg %p270
        %p491 = pneg %p267
        %s492 = sand.u32 %s257, 1
        %s493 = scalar_lea.sflag [#allocation15], %s492
        %s494 = sand.u32 %s257, 1
        %s495 = smul.addr %s494, 16
        %s496 = scalar_lea.vmem [#allocation14], %s495
        %s497 = smul.u32 2, %s35
        %s498 = smul.u32 2, %s35
        %s499 = smul.u32 2, %s35
        %s500 = smul.u32 2, %s35
        %p501 = scmp.lt.s32.totalorder %s500, 3
        %s502 = scalar_select %p501, %s500, 3
        %s503 = scalar_lea.vmem %s3, %s502
        %s504 = smul.u32 2, %s35
        %s505 = smul.u32 2, %s35
        %s506 = smul.u32 2, %s35
        %v507 = vld [vmem:[%s413] sm:$0xff]
        %v508 = vld [vmem:[%s413 + $0x8] sm:$0xff]
        %v509 = vld [vmem:[%s431] sm:$0xff]
        %v510 = vld [vmem:[%s431 + $0x8] sm:$0xff]
        %v511 = vld [vmem:[%s422] sm:$0xff]
        %v512 = vld [vmem:[%s422 + $0x8] sm:$0xff]
        %v513 = vld [vmem:[%s503] sm:$0x1]
        %v514 = vld [vmem:[%s503 + $0x1] sm:$0x1]
        %v515 = vld [vmem:[#allocation8] sm:$0xff]
        %v516 = vld [vmem:[#allocation8 + $0x8] sm:$0xff]
        %v517 = vld [vmem:[#allocation8 + $0x10] sm:$0xff]
        %v518 = vld [vmem:[#allocation8 + $0x18] sm:$0xff]
        %vm519 = vcmask 261120
        %v521 = vsel %vm519, %v507, 0
        %v524 = vsel %vm519, %v508, 0
        %526 = vmatprep.subr.mxu0 0.0
        %527 = vmatpush1.msra.mxu0 %v515
        %528 = vmatprep.subr.mxu0 0.0
        %529 = vmatpush1.msra.mxu0 %v516
        %530 = vmatprep.subr.mxu0 0.0
        %531 = vmatpush1.msra.mxu0 %v517
        %532 = vmatprep.subr.mxu0 0.0
        %533 = vmatpush1.msra.mxu0 %v518
        %534 = vmatprep.subr.mxu0 0.0
        %535 = vmatpush1.msra.mxu0 0.0
        %536 = vmatprep.subr.mxu0 0.0
        %537 = vmatpush1.msra.mxu0 0.0
        %538 = vmatprep.subr.mxu0 0.0
        %539 = vmatpush1.msra.mxu0 0.0
        %540 = vmatprep.subr.mxu0 0.0
        %541 = vmatpush1.msra.mxu0 0.0
        %542 = vmatprep.subr.mxu0 0.0
        %543 = vmatpush1.msra.mxu0 0.0
        %544 = vmatprep.subr.mxu0 0.0
        %545 = vmatpush1.msra.mxu0 0.0
        %546 = vmatprep.subr.mxu0 0.0
        %547 = vmatpush1.msra.mxu0 0.0
        %548 = vmatprep.subr.mxu0 0.0
        %549 = vmatpush1.msra.mxu0 0.0
        %550 = vmatprep.subr.mxu0 0.0
        %551 = vmatpush1.msra.mxu0 0.0
        %552 = vmatprep.subr.mxu0 0.0
        %553 = vmatpush1.msra.mxu0 0.0
        %554 = vmatprep.subr.mxu0 0.0
        %555 = vmatpush1.msra.mxu0 0.0
        %556 = vmatprep.subr.mxu0 0.0
        %557 = vmatpush1.msra.mxu0 0.0
        %558 = vmatprep.subr.mxu0 0.0
        %559 = vmatpush1.msra.mxu0 0.0
        %560 = vmatprep.subr.mxu0 0.0
        %561 = vmatpush1.msra.mxu0 0.0
        %562 = vmatprep.subr.mxu0 0.0
        %563 = vmatpush1.msra.mxu0 0.0
        %564 = vmatprep.subr.mxu0 0.0
        %565 = vmatpush1.msra.mxu0 0.0
        %566 = vmatprep.subr.mxu0 0.0
        %567 = vmatpush1.msra.mxu0 0.0
        %568 = vmatprep.subr.mxu0 0.0
        %569 = vmatpush1.msra.mxu0 0.0
        %570 = vmatprep.subr.mxu0 0.0
        %571 = vmatpush1.msra.mxu0 0.0
        %572 = vmatprep.subr.mxu0 0.0
        %573 = vmatpush1.msra.mxu0 0.0
        %574 = vmatprep.subr.mxu0 0.0
        %575 = vmatpush1.msra.mxu0 0.0
        %576 = vmatprep.subr.mxu0 0.0
        %577 = vmatpush1.msra.mxu0 0.0
        %578 = vmatprep.subr.mxu0 0.0
        %579 = vmatpush1.msra.mxu0 0.0
        %580 = vmatprep.subr.mxu0 0.0
        %581 = vmatpush1.msra.mxu0 0.0
        %582 = vmatprep.subr.mxu0 0.0
        %583 = vmatpush1.msra.mxu0 0.0
        %584 = vmatprep.subr.mxu0 0.0
        %585 = vmatpush1.msra.mxu0 0.0
        %586 = vmatprep.subr.mxu0 0.0
        %587 = vmatpush1.msra.mxu0 0.0
        %588 = vmatprep.subr.mxu0 0.0
        %589 = vmatpush1.msra.mxu0 0.0
        %590 = vmatprep.mubr.f32.mxu0 0.0
        %591 = vmatmul.mubr.f32.gmra.mrb[0].mxu0 %v521
        %v592 = vpop.f32.mrb[0].mxu0
        %v593 = vadd.f32 0.0, %v592
        %v594 = vpop.f32.mrb[0].mxu0
        %595 = vmatprep.mubr.f32.mxu0 0.0
        %596 = vmatmul.mubr.f32.gmra.mrb[0].mxu0 %v524
        %v597 = vpop.f32.mrb[0].mxu0
        %v598 = vadd.f32 0.0, %v597
        %v599 = vpop.f32.mrb[0].mxu0
        %600 = vdwg.mxu0
        %v601 = vsub.f32 %v513, 1.0
        %v602 = vsub.f32 %v514, 1.0
        %v603 = vmul.f32 %v601, 1e+30
        %v604 = vmul.f32 %v602, 1e+30
        %v607 = vlaneseq
        %v608 = vshrl.u32 %v607, 7
        %v609 = vsub.s32 0, %v608
        %v610 = vrot.slane %v603, %v609
        %v611 = vlaneseq
        %v612 = vshrl.u32 %v611, 7
        %v613 = vsub.s32 0, %v612
        %v614 = vrot.slane %v604, %v613
        %v618 = vsel %vm519, %v593, 0
        %v621 = vsel %vm519, %v511, 0
        %623 = vmatprep.subr.mxu0 0.0
        %624 = vmatpush1.xpose.msra.mxu0 %v621
        %625 = vmatprep.subr.mxu0 0.0
        %626 = vmatpush1.xpose.msra.mxu0 0.0
        %627 = vmatprep.subr.mxu0 0.0
        %628 = vmatpush1.xpose.msra.mxu0 0.0
        %629 = vmatprep.subr.mxu0 0.0
        %630 = vmatpush1.xpose.msra.mxu0 0.0
        %631 = vmatprep.subr.mxu0 0.0
        %632 = vmatpush1.xpose.msra.mxu0 0.0
        %633 = vmatprep.subr.mxu0 0.0
        %634 = vmatpush1.xpose.msra.mxu0 0.0
        %635 = vmatprep.subr.mxu0 0.0
        %636 = vmatpush1.xpose.msra.mxu0 0.0
        %637 = vmatprep.subr.mxu0 0.0
        %638 = vmatpush1.xpose.msra.mxu0 0.0
        %639 = vmatprep.subr.mxu0 0.0
        %640 = vmatpush1.xpose.msra.mxu0 0.0
        %641 = vmatprep.subr.mxu0 0.0
        %642 = vmatpush1.xpose.msra.mxu0 0.0
        %643 = vmatprep.subr.mxu0 0.0
        %644 = vmatpush1.xpose.msra.mxu0 0.0
        %645 = vmatprep.subr.mxu0 0.0
        %646 = vmatpush1.xpose.msra.mxu0 0.0
        %647 = vmatprep.subr.mxu0 0.0
        %648 = vmatpush1.xpose.msra.mxu0 0.0
        %649 = vmatprep.subr.mxu0 0.0
        %650 = vmatpush1.xpose.msra.mxu0 0.0
        %651 = vmatprep.subr.mxu0 0.0
        %652 = vmatpush1.xpose.msra.mxu0 0.0
        %653 = vmatprep.subr.mxu0 0.0
        %654 = vmatpush1.xpose.msra.mxu0 0.0
        %655 = vmatprep.subr.mxu0 0.0
        %656 = vmatpush1.xpose.msra.mxu0 0.0
        %657 = vmatprep.subr.mxu0 0.0
        %658 = vmatpush1.xpose.msra.mxu0 0.0
        %659 = vmatprep.subr.mxu0 0.0
        %660 = vmatpush1.xpose.msra.mxu0 0.0
        %661 = vmatprep.subr.mxu0 0.0
        %662 = vmatpush1.xpose.msra.mxu0 0.0
        %663 = vmatprep.subr.mxu0 0.0
        %664 = vmatpush1.xpose.msra.mxu0 0.0
        %665 = vmatprep.subr.mxu0 0.0
        %666 = vmatpush1.xpose.msra.mxu0 0.0
        %667 = vmatprep.subr.mxu0 0.0
        %668 = vmatpush1.xpose.msra.mxu0 0.0
        %669 = vmatprep.subr.mxu0 0.0
        %670 = vmatpush1.xpose.msra.mxu0 0.0
        %671 = vmatprep.subr.mxu0 0.0
        %672 = vmatpush1.xpose.msra.mxu0 0.0
        %673 = vmatprep.subr.mxu0 0.0
        %674 = vmatpush1.xpose.msra.mxu0 0.0
        %675 = vmatprep.subr.mxu0 0.0
        %676 = vmatpush1.xpose.msra.mxu0 0.0
        %677 = vmatprep.subr.mxu0 0.0
        %678 = vmatpush1.xpose.msra.mxu0 0.0
        %679 = vmatprep.subr.mxu0 0.0
        %680 = vmatpush1.xpose.msra.mxu0 0.0
        %681 = vmatprep.subr.mxu0 0.0
        %682 = vmatpush1.xpose.msra.mxu0 0.0
        %683 = vmatprep.subr.mxu0 0.0
        %684 = vmatpush1.xpose.msra.mxu0 0.0
        %685 = vmatprep.subr.mxu0 0.0
        %686 = vmatpush1.xpose.msra.mxu0 0.0
        %687 = vmatprep.mubr.f32.mxu0 0.0
        %688 = vmatmul.mubr.f32.gmra.mrb[0].mxu0 %v618
        %v689 = vpop.f32.mrb[0].mxu0
        %v690 = vadd.f32 %v610, %v689
        %v691 = vpop.f32.mrb[0].mxu0
        %692 = vdwg.mxu0
        %v694 = vsel %vm519, %v598, 0
        %v697 = vsel %vm519, %v512, 0
        %699 = vmatprep.subr.mxu0 0.0
        %700 = vmatpush1.xpose.msra.mxu0 %v697
        %701 = vmatprep.subr.mxu0 0.0
        %702 = vmatpush1.xpose.msra.mxu0 0.0
        %703 = vmatprep.subr.mxu0 0.0
        %704 = vmatpush1.xpose.msra.mxu0 0.0
        %705 = vmatprep.subr.mxu0 0.0
        %706 = vmatpush1.xpose.msra.mxu0 0.0
        %707 = vmatprep.subr.mxu0 0.0
        %708 = vmatpush1.xpose.msra.mxu0 0.0
        %709 = vmatprep.subr.mxu0 0.0
        %710 = vmatpush1.xpose.msra.mxu0 0.0
        %711 = vmatprep.subr.mxu0 0.0
        %712 = vmatpush1.xpose.msra.mxu0 0.0
        %713 = vmatprep.subr.mxu0 0.0
        %714 = vmatpush1.xpose.msra.mxu0 0.0
        %715 = vmatprep.subr.mxu0 0.0
        %716 = vmatpush1.xpose.msra.mxu0 0.0
        %717 = vmatprep.subr.mxu0 0.0
        %718 = vmatpush1.xpose.msra.mxu0 0.0
        %719 = vmatprep.subr.mxu0 0.0
        %720 = vmatpush1.xpose.msra.mxu0 0.0
        %721 = vmatprep.subr.mxu0 0.0
        %722 = vmatpush1.xpose.msra.mxu0 0.0
        %723 = vmatprep.subr.mxu0 0.0
        %724 = vmatpush1.xpose.msra.mxu0 0.0
        %725 = vmatprep.subr.mxu0 0.0
        %726 = vmatpush1.xpose.msra.mxu0 0.0
        %727 = vmatprep.subr.mxu0 0.0
        %728 = vmatpush1.xpose.msra.mxu0 0.0
        %729 = vmatprep.subr.mxu0 0.0
        %730 = vmatpush1.xpose.msra.mxu0 0.0
        %731 = vmatprep.subr.mxu0 0.0
        %732 = vmatpush1.xpose.msra.mxu0 0.0
        %733 = vmatprep.subr.mxu0 0.0
        %734 = vmatpush1.xpose.msra.mxu0 0.0
        %735 = vmatprep.subr.mxu0 0.0
        %736 = vmatpush1.xpose.msra.mxu0 0.0
        %737 = vmatprep.subr.mxu0 0.0
        %738 = vmatpush1.xpose.msra.mxu0 0.0
        %739 = vmatprep.subr.mxu0 0.0
        %740 = vmatpush1.xpose.msra.mxu0 0.0
        %741 = vmatprep.subr.mxu0 0.0
        %742 = vmatpush1.xpose.msra.mxu0 0.0
        %743 = vmatprep.subr.mxu0 0.0
        %744 = vmatpush1.xpose.msra.mxu0 0.0
        %745 = vmatprep.subr.mxu0 0.0
        %746 = vmatpush1.xpose.msra.mxu0 0.0
        %747 = vmatprep.subr.mxu0 0.0
        %748 = vmatpush1.xpose.msra.mxu0 0.0
        %749 = vmatprep.subr.mxu0 0.0
        %750 = vmatpush1.xpose.msra.mxu0 0.0
        %751 = vmatprep.subr.mxu0 0.0
        %752 = vmatpush1.xpose.msra.mxu0 0.0
        %753 = vmatprep.subr.mxu0 0.0
        %754 = vmatpush1.xpose.msra.mxu0 0.0
        %755 = vmatprep.subr.mxu0 0.0
        %756 = vmatpush1.xpose.msra.mxu0 0.0
        %757 = vmatprep.subr.mxu0 0.0
        %758 = vmatpush1.xpose.msra.mxu0 0.0
        %759 = vmatprep.subr.mxu0 0.0
        %760 = vmatpush1.xpose.msra.mxu0 0.0
        %761 = vmatprep.subr.mxu0 0.0
        %762 = vmatpush1.xpose.msra.mxu0 0.0
        %763 = vmatprep.mubr.f32.mxu0 0.0
        %764 = vmatmul.mubr.f32.gmra.mrb[0].mxu0 %v694
        %v765 = vpop.f32.mrb[0].mxu0
        %v766 = vadd.f32 %v614, %v765
        %v767 = vpop.f32.mrb[0].mxu0
        %768 = vdwg.mxu0
        %vm769 = vcmask 64512
        %v770 = vsel %vm769, %v690, -inf
        %771 = vmax.xlane.f32.xlu0 %v770
        %v772 = vpop.xlane.xlu0 %771
        %v773 = vsel %vm769, %v766, -inf
        %774 = vmax.xlane.f32.xlu0 %v773
        %v775 = vpop.xlane.xlu0 %774
        %v776 = vsub.f32 %v690, %v772
        %v777 = vsub.f32 %v766, %v775
        %v778 = vmul.f32 %v776, 1.442695
        %v779 = vpow.pop %v778
        %v780 = vmul.f32 %v777, 1.442695
        %v781 = vpow.pop %v780
        %v782 = vsel %vm769, %v779, 0.0
        %783 = vadd.xlane.f32.xlu0 %v782
        %v784 = vpop.xlane.xlu0 %783
        %v785 = vsel %vm769, %v781, 0.0
        %786 = vadd.xlane.f32.xlu0 %v785
        %v787 = vpop.xlane.xlu0 %786
        %v788 = vrcp.pop %v784
        %v789 = vrcp.pop %v787
        %v790 = vmul.f32 %v779, %v788
        %v791 = vmul.f32 %v781, %v789
        %v794 = vlaneseq
        %v795 = vshrl.u32 %v794, 7
        %v796 = vsub.s32 0, %v795
        %v797 = vrot.slane %v513, %v796
        %v798 = vlaneseq
        %v799 = vshrl.u32 %v798, 7
        %v800 = vsub.s32 0, %v799
        %v801 = vrot.slane %v514, %v800
        %v804 = vmul.f32 %v790, %v797
        %v805 = vmul.f32 %v791, %v801
        %v807 = vsel %vm769, %v804, 0
        %809 = vmatprep.subr.mxu0 0.0
        %810 = vmatpush1.msra.mxu0 %v511
        %811 = vmatprep.subr.mxu0 0.0
        %812 = vmatpush1.msra.mxu0 0.0
        %813 = vmatprep.subr.mxu0 0.0
        %814 = vmatpush1.msra.mxu0 0.0
        %815 = vmatprep.subr.mxu0 0.0
        %816 = vmatpush1.msra.mxu0 0.0
        %817 = vmatprep.subr.mxu0 0.0
        %818 = vmatpush1.msra.mxu0 0.0
        %819 = vmatprep.subr.mxu0 0.0
        %820 = vmatpush1.msra.mxu0 0.0
        %821 = vmatprep.subr.mxu0 0.0
        %822 = vmatpush1.msra.mxu0 0.0
        %823 = vmatprep.subr.mxu0 0.0
        %824 = vmatpush1.msra.mxu0 0.0
        %825 = vmatprep.subr.mxu0 0.0
        %826 = vmatpush1.msra.mxu0 0.0
        %827 = vmatprep.subr.mxu0 0.0
        %828 = vmatpush1.msra.mxu0 0.0
        %829 = vmatprep.subr.mxu0 0.0
        %830 = vmatpush1.msra.mxu0 0.0
        %831 = vmatprep.subr.mxu0 0.0
        %832 = vmatpush1.msra.mxu0 0.0
        %833 = vmatprep.subr.mxu0 0.0
        %834 = vmatpush1.msra.mxu0 0.0
        %835 = vmatprep.subr.mxu0 0.0
        %836 = vmatpush1.msra.mxu0 0.0
        %837 = vmatprep.subr.mxu0 0.0
        %838 = vmatpush1.msra.mxu0 0.0
        %839 = vmatprep.subr.mxu0 0.0
        %840 = vmatpush1.msra.mxu0 0.0
        %841 = vmatprep.subr.mxu0 0.0
        %842 = vmatpush1.msra.mxu0 0.0
        %843 = vmatprep.subr.mxu0 0.0
        %844 = vmatpush1.msra.mxu0 0.0
        %845 = vmatprep.subr.mxu0 0.0
        %846 = vmatpush1.msra.mxu0 0.0
        %847 = vmatprep.subr.mxu0 0.0
        %848 = vmatpush1.msra.mxu0 0.0
        %849 = vmatprep.subr.mxu0 0.0
        %850 = vmatpush1.msra.mxu0 0.0
        %851 = vmatprep.subr.mxu0 0.0
        %852 = vmatpush1.msra.mxu0 0.0
        %853 = vmatprep.subr.mxu0 0.0
        %854 = vmatpush1.msra.mxu0 0.0
        %855 = vmatprep.subr.mxu0 0.0
        %856 = vmatpush1.msra.mxu0 0.0
        %857 = vmatprep.subr.mxu0 0.0
        %858 = vmatpush1.msra.mxu0 0.0
        %859 = vmatprep.subr.mxu0 0.0
        %860 = vmatpush1.msra.mxu0 0.0
        %861 = vmatprep.subr.mxu0 0.0
        %862 = vmatpush1.msra.mxu0 0.0
        %863 = vmatprep.subr.mxu0 0.0
        %864 = vmatpush1.msra.mxu0 0.0
        %865 = vmatprep.subr.mxu0 0.0
        %866 = vmatpush1.msra.mxu0 0.0
        %867 = vmatprep.subr.mxu0 0.0
        %868 = vmatpush1.msra.mxu0 0.0
        %869 = vmatprep.subr.mxu0 0.0
        %870 = vmatpush1.msra.mxu0 0.0
        %871 = vmatprep.subr.mxu0 0.0
        %872 = vmatpush1.msra.mxu0 0.0
        %873 = vmatprep.mubr.f32.mxu0 0.0
        %874 = vmatmul.mubr.f32.gmra.mrb[0].mxu0 %v807
        %v875 = vpop.f32.mrb[0].mxu0
        %v876 = vadd.f32 0.0, %v875
        %v877 = vpop.f32.mrb[0].mxu0
        %878 = vdwg.mxu0
        %v880 = vsel %vm769, %v805, 0
        %882 = vmatprep.subr.mxu0 0.0
        %883 = vmatpush1.msra.mxu0 %v512
        %884 = vmatprep.subr.mxu0 0.0
        %885 = vmatpush1.msra.mxu0 0.0
        %886 = vmatprep.subr.mxu0 0.0
        %887 = vmatpush1.msra.mxu0 0.0
        %888 = vmatprep.subr.mxu0 0.0
        %889 = vmatpush1.msra.mxu0 0.0
        %890 = vmatprep.subr.mxu0 0.0
        %891 = vmatpush1.msra.mxu0 0.0
        %892 = vmatprep.subr.mxu0 0.0
        %893 = vmatpush1.msra.mxu0 0.0
        %894 = vmatprep.subr.mxu0 0.0
        %895 = vmatpush1.msra.mxu0 0.0
        %896 = vmatprep.subr.mxu0 0.0
        %897 = vmatpush1.msra.mxu0 0.0
        %898 = vmatprep.subr.mxu0 0.0
        %899 = vmatpush1.msra.mxu0 0.0
        %900 = vmatprep.subr.mxu0 0.0
        %901 = vmatpush1.msra.mxu0 0.0
        %902 = vmatprep.subr.mxu0 0.0
        %903 = vmatpush1.msra.mxu0 0.0
        %904 = vmatprep.subr.mxu0 0.0
        %905 = vmatpush1.msra.mxu0 0.0
        %906 = vmatprep.subr.mxu0 0.0
        %907 = vmatpush1.msra.mxu0 0.0
        %908 = vmatprep.subr.mxu0 0.0
        %909 = vmatpush1.msra.mxu0 0.0
        %910 = vmatprep.subr.mxu0 0.0
        %911 = vmatpush1.msra.mxu0 0.0
        %912 = vmatprep.subr.mxu0 0.0
        %913 = vmatpush1.msra.mxu0 0.0
        %914 = vmatprep.subr.mxu0 0.0
        %915 = vmatpush1.msra.mxu0 0.0
        %916 = vmatprep.subr.mxu0 0.0
        %917 = vmatpush1.msra.mxu0 0.0
        %918 = vmatprep.subr.mxu0 0.0
        %919 = vmatpush1.msra.mxu0 0.0
        %920 = vmatprep.subr.mxu0 0.0
        %921 = vmatpush1.msra.mxu0 0.0
        %922 = vmatprep.subr.mxu0 0.0
        %923 = vmatpush1.msra.mxu0 0.0
        %924 = vmatprep.subr.mxu0 0.0
        %925 = vmatpush1.msra.mxu0 0.0
        %926 = vmatprep.subr.mxu0 0.0
        %927 = vmatpush1.msra.mxu0 0.0
        %928 = vmatprep.subr.mxu0 0.0
        %929 = vmatpush1.msra.mxu0 0.0
        %930 = vmatprep.subr.mxu0 0.0
        %931 = vmatpush1.msra.mxu0 0.0
        %932 = vmatprep.subr.mxu0 0.0
        %933 = vmatpush1.msra.mxu0 0.0
        %934 = vmatprep.subr.mxu0 0.0
        %935 = vmatpush1.msra.mxu0 0.0
        %936 = vmatprep.subr.mxu0 0.0
        %937 = vmatpush1.msra.mxu0 0.0
        %938 = vmatprep.subr.mxu0 0.0
        %939 = vmatpush1.msra.mxu0 0.0
        %940 = vmatprep.subr.mxu0 0.0
        %941 = vmatpush1.msra.mxu0 0.0
        %942 = vmatprep.subr.mxu0 0.0
        %943 = vmatpush1.msra.mxu0 0.0
        %944 = vmatprep.subr.mxu0 0.0
        %945 = vmatpush1.msra.mxu0 0.0
        %946 = vmatprep.mubr.f32.mxu0 0.0
        %947 = vmatmul.mubr.f32.gmra.mrb[0].mxu0 %v880
        %v948 = vpop.f32.mrb[0].mxu0
        %v949 = vadd.f32 0.0, %v948
        %v950 = vpop.f32.mrb[0].mxu0
        %951 = vdwg.mxu0
        %v952 = vld [vmem:[#allocation10] sm:$0xff]
        %v953 = vld [vmem:[#allocation10 + $0x8] sm:$0xff]
        %v954 = vld [vmem:[#allocation10 + $0x10] sm:$0xff]
        %v955 = vld [vmem:[#allocation10 + $0x18] sm:$0xff]
        %v956 = vld [vmem:[#allocation11] sm:$0xff]
        %v957 = vld [vmem:[#allocation11 + $0x8] sm:$0xff]
        %v958 = vld [vmem:[#allocation11 + $0x10] sm:$0xff]
        %v959 = vld [vmem:[#allocation11 + $0x18] sm:$0xff]
        %v961 = vsel %vm519, %v876, 0
        %v964 = vsel %vm519, %v949, 0
        %966 = vmatprep.subr.mxu0 0.0
        %967 = vmatpush1.msra.mxu0 %v956
        %968 = vmatprep.subr.mxu0 0.0
        %969 = vmatpush1.msra.mxu0 %v957
        %970 = vmatprep.subr.mxu0 0.0
        %971 = vmatpush1.msra.mxu0 %v958
        %972 = vmatprep.subr.mxu0 0.0
        %973 = vmatpush1.msra.mxu0 %v959
        %974 = vmatprep.subr.mxu0 0.0
        %975 = vmatpush1.msra.mxu0 0.0
        %976 = vmatprep.subr.mxu0 0.0
        %977 = vmatpush1.msra.mxu0 0.0
        %978 = vmatprep.subr.mxu0 0.0
        %979 = vmatpush1.msra.mxu0 0.0
        %980 = vmatprep.subr.mxu0 0.0
        %981 = vmatpush1.msra.mxu0 0.0
        %982 = vmatprep.subr.mxu0 0.0
        %983 = vmatpush1.msra.mxu0 0.0
        %984 = vmatprep.subr.mxu0 0.0
        %985 = vmatpush1.msra.mxu0 0.0
        %986 = vmatprep.subr.mxu0 0.0
        %987 = vmatpush1.msra.mxu0 0.0
        %988 = vmatprep.subr.mxu0 0.0
        %989 = vmatpush1.msra.mxu0 0.0
        %990 = vmatprep.subr.mxu0 0.0
        %991 = vmatpush1.msra.mxu0 0.0
        %992 = vmatprep.subr.mxu0 0.0
        %993 = vmatpush1.msra.mxu0 0.0
        %994 = vmatprep.subr.mxu0 0.0
        %995 = vmatpush1.msra.mxu0 0.0
        %996 = vmatprep.subr.mxu0 0.0
        %997 = vmatpush1.msra.mxu0 0.0
        %998 = vmatprep.subr.mxu0 0.0
        %999 = vmatpush1.msra.mxu0 0.0
        %1000 = vmatprep.subr.mxu0 0.0
        %1001 = vmatpush1.msra.mxu0 0.0
        %1002 = vmatprep.subr.mxu0 0.0
        %1003 = vmatpush1.msra.mxu0 0.0
        %1004 = vmatprep.subr.mxu0 0.0
        %1005 = vmatpush1.msra.mxu0 0.0
        %1006 = vmatprep.subr.mxu0 0.0
        %1007 = vmatpush1.msra.mxu0 0.0
        %1008 = vmatprep.subr.mxu0 0.0
        %1009 = vmatpush1.msra.mxu0 0.0
        %1010 = vmatprep.subr.mxu0 0.0
        %1011 = vmatpush1.msra.mxu0 0.0
        %1012 = vmatprep.subr.mxu0 0.0
        %1013 = vmatpush1.msra.mxu0 0.0
        %1014 = vmatprep.subr.mxu0 0.0
        %1015 = vmatpush1.msra.mxu0 0.0
        %1016 = vmatprep.subr.mxu0 0.0
        %1017 = vmatpush1.msra.mxu0 0.0
        %1018 = vmatprep.subr.mxu0 0.0
        %1019 = vmatpush1.msra.mxu0 0.0
        %1020 = vmatprep.subr.mxu0 0.0
        %1021 = vmatpush1.msra.mxu0 0.0
        %1022 = vmatprep.subr.mxu0 0.0
        %1023 = vmatpush1.msra.mxu0 0.0
        %1024 = vmatprep.subr.mxu0 0.0
        %1025 = vmatpush1.msra.mxu0 0.0
        %1026 = vmatprep.subr.mxu0 0.0
        %1027 = vmatpush1.msra.mxu0 0.0
        %1028 = vmatprep.subr.mxu0 0.0
        %1029 = vmatpush1.msra.mxu0 0.0
        %1030 = vmatprep.mubr.f32.mxu0 0.0
        %1031 = vmatmul.mubr.f32.gmra.mrb[0].mxu0 %v961
        %v1032 = vpop.f32.mrb[0].mxu0
        %v1033 = vadd.f32 0.0, %v1032
        %v1034 = vpop.f32.mrb[0].mxu0
        %1035 = vmatprep.mubr.f32.mxu0 0.0
        %1036 = vmatmul.mubr.f32.gmra.mrb[0].mxu0 %v964
        %v1037 = vpop.f32.mrb[0].mxu0
        %v1038 = vadd.f32 0.0, %v1037
        %v1039 = vpop.f32.mrb[0].mxu0
        %1040 = vdwg.mxu0
        %v1042 = vsel %vm519, %v509, 0
        %v1045 = vsel %vm519, %v510, 0
        %1047 = vmatprep.subr.mxu0 0.0
        %1048 = vmatpush1.msra.mxu0 %v952
        %1049 = vmatprep.subr.mxu0 0.0
        %1050 = vmatpush1.msra.mxu0 %v953
        %1051 = vmatprep.subr.mxu0 0.0
        %1052 = vmatpush1.msra.mxu0 %v954
        %1053 = vmatprep.subr.mxu0 0.0
        %1054 = vmatpush1.msra.mxu0 %v955
        %1055 = vmatprep.subr.mxu0 0.0
        %1056 = vmatpush1.msra.mxu0 0.0
        %1057 = vmatprep.subr.mxu0 0.0
        %1058 = vmatpush1.msra.mxu0 0.0
        %1059 = vmatprep.subr.mxu0 0.0
        %1060 = vmatpush1.msra.mxu0 0.0
        %1061 = vmatprep.subr.mxu0 0.0
        %1062 = vmatpush1.msra.mxu0 0.0
        %1063 = vmatprep.subr.mxu0 0.0
        %1064 = vmatpush1.msra.mxu0 0.0
        %1065 = vmatprep.subr.mxu0 0.0
        %1066 = vmatpush1.msra.mxu0 0.0
        %1067 = vmatprep.subr.mxu0 0.0
        %1068 = vmatpush1.msra.mxu0 0.0
        %1069 = vmatprep.subr.mxu0 0.0
        %1070 = vmatpush1.msra.mxu0 0.0
        %1071 = vmatprep.subr.mxu0 0.0
        %1072 = vmatpush1.msra.mxu0 0.0
        %1073 = vmatprep.subr.mxu0 0.0
        %1074 = vmatpush1.msra.mxu0 0.0
        %1075 = vmatprep.subr.mxu0 0.0
        %1076 = vmatpush1.msra.mxu0 0.0
        %1077 = vmatprep.subr.mxu0 0.0
        %1078 = vmatpush1.msra.mxu0 0.0
        %1079 = vmatprep.subr.mxu0 0.0
        %1080 = vmatpush1.msra.mxu0 0.0
        %1081 = vmatprep.subr.mxu0 0.0
        %1082 = vmatpush1.msra.mxu0 0.0
        %1083 = vmatprep.subr.mxu0 0.0
        %1084 = vmatpush1.msra.mxu0 0.0
        %1085 = vmatprep.subr.mxu0 0.0
        %1086 = vmatpush1.msra.mxu0 0.0
        %1087 = vmatprep.subr.mxu0 0.0
        %1088 = vmatpush1.msra.mxu0 0.0
        %1089 = vmatprep.subr.mxu0 0.0
        %1090 = vmatpush1.msra.mxu0 0.0
        %1091 = vmatprep.subr.mxu0 0.0
        %1092 = vmatpush1.msra.mxu0 0.0
        %1093 = vmatprep.subr.mxu0 0.0
        %1094 = vmatpush1.msra.mxu0 0.0
        %1095 = vmatprep.subr.mxu0 0.0
        %1096 = vmatpush1.msra.mxu0 0.0
        %1097 = vmatprep.subr.mxu0 0.0
        %1098 = vmatpush1.msra.mxu0 0.0
        %1099 = vmatprep.subr.mxu0 0.0
        %1100 = vmatpush1.msra.mxu0 0.0
        %1101 = vmatprep.subr.mxu0 0.0
        %1102 = vmatpush1.msra.mxu0 0.0
        %1103 = vmatprep.subr.mxu0 0.0
        %1104 = vmatpush1.msra.mxu0 0.0
        %1105 = vmatprep.subr.mxu0 0.0
        %1106 = vmatpush1.msra.mxu0 0.0
        %1107 = vmatprep.subr.mxu0 0.0
        %1108 = vmatpush1.msra.mxu0 0.0
        %1109 = vmatprep.subr.mxu0 0.0
        %1110 = vmatpush1.msra.mxu0 0.0
        %1111 = vmatprep.mubr.f32.mxu0 0.0
        %1112 = vmatmul.mubr.f32.gmra.mrb[0].mxu0 %v1042
        %v1113 = vpop.f32.mrb[0].mxu0
        %v1114 = vadd.f32 %v1033, %v1113
        %v1115 = vpop.f32.mrb[0].mxu0
        %1116 = vmatprep.mubr.f32.mxu0 0.0
        %1117 = vmatmul.mubr.f32.gmra.mrb[0].mxu0 %v1045
        %v1118 = vpop.f32.mrb[0].mxu0
        %v1119 = vadd.f32 %v1038, %v1118
        %v1120 = vpop.f32.mrb[0].mxu0
        %1121 = vdwg.mxu0
        %v1122 = vld [vmem:[%s7] sm:$0x1]
        %v1124 = vlaneseq
        %v1125 = vshrl.u32 %v1124, 7
        %v1126 = vsub.s32 0, %v1125
        %v1127 = vrot.slane %v1122, %v1126
        %v1129 = vadd.f32 %v1114, %v1127
        %v1130 = vadd.f32 %v1119, %v1127
        %v1131 = vxor.u32 %v1129, 2147483648
        %v1132 = vxor.u32 %v1130, 2147483648
        %v1133 = vmul.f32 %v1131, 1.442695
        %v1134 = vpow.pop %v1133
        %v1135 = vmul.f32 %v1132, 1.442695
        %v1136 = vpow.pop %v1135
        %v1137 = vadd.f32 %v1134, 1.0
        %v1138 = vadd.f32 %v1136, 1.0
        %v1139 = vrcp.pop %v1137
        %v1140 = vmul.f32 1.0, %v1139
        %v1141 = vrcp.pop %v1138
        %v1142 = vmul.f32 1.0, %v1141
        %1145 = vrot.lane.b32.xlu0 %v1129, 96
        %v1146 = vpop.permute.xlu0 %1145
        %1147 = vrot.lane.b32.xlu0 %v1130, 96
        %v1148 = vpop.permute.xlu0 %1147
        %v1151 = vmul.f32 %v1140, %v1146
        %v1152 = vmul.f32 %v1142, %v1148
        %v1153 = vsub.f32 1.0, %v1140
        %v1154 = vsub.f32 1.0, %v1142
        %v1155 = vmul.f32 %v1153, %v509
        %v1156 = vmul.f32 %v1154, %v510
        %v1157 = vadd.f32 %v1151, %v1155
        %v1158 = vadd.f32 %v1152, %v1156
        %v1159 = vsel %vm519, %v1157, 0.0
        %v1160 = vsel %vm519, %v1158, 0.0
        %1161 = vst [vmem:[%s489] sm:$0xff] %v1159
        %1162 = vst [vmem:[%s489 + $0x8] sm:$0xff] %v1160
        %v1163 = vsel %vm769, %v804, 0.0
        %v1164 = vsel %vm769, %v805, 0.0
        %1165 = vst [vmem:[%s496] sm:$0xff] %v1163
        %1166 = vst [vmem:[%s496 + $0x8] sm:$0xff] %v1164
        %s1167 = sand.u32 %s231, 1
        %s1168 = scalar_lea.sflag [#allocation4], %s1167
        %s1169 = sand.u32 %s231, 1
        %s1170 = smul.addr %s1169, 16
        %s1171 = scalar_lea.vmem [#allocation13], %s1170
        %s1172 = sand.u32 %s257, 1
        %s1173 = scalar_lea.sflag [#allocation15], %s1172
        %s1174 = sand.u32 %s257, 1
        %s1175 = smul.addr %s1174, 16
        %s1176 = scalar_lea.vmem [#allocation14], %s1175
        // Predicated region
        $region77: #{tpu_custom_call.1} parent=51 // pred_check
          %p1177 = pneg %p241
        $region78: #{tpu_custom_call.1} parent=51 // pred_check_branch
          %1179 = sbr.rel (%p1177) target = $region80
        $region79: #{tpu_custom_call.1} parent=51 // pred_region
          %s1180 = smul.u32 2, %s35
          %s1182 = ssub.s32 256, 256
          %1183 = vsyncadd %s1168, %s1182
          %s1184 = smul.addr %s1180, 128
          %s1185 = scalar_lea.hbm %s8, %s1184
          %s1186 = sshll.u32 %s1171, 4
          %s1187 = int_to_ptr.vmem [resolvable:$true] %s1186
          %1192 = dma.vmem_to_hbm [thread:$0]  %s1187, 256, %s1185, %s1168, 128, 128, 8
        $region80: #{tpu_custom_call.1} parent=51 // pred_fallthru
          _
        // Predicated region
        $region81: #{tpu_custom_call.1} parent=51 // pred_check
          %p1193 = pneg %p267
        $region82: #{tpu_custom_call.1} parent=51 // pred_check_branch
          %1195 = sbr.rel (%p1193) target = $region84
        $region83: #{tpu_custom_call.1} parent=51 // pred_region
          %s1196 = smul.u32 2, %s35
          %s1198 = ssub.s32 256, 256
          %1199 = vsyncadd %s1173, %s1198
          %s1200 = smul.addr %s1196, 128
          %s1201 = scalar_lea.hbm %s9, %s1200
          %s1202 = sshll.u32 %s1176, 4
          %s1203 = int_to_ptr.vmem [resolvable:$true] %s1202
          %1208 = dma.vmem_to_hbm [thread:$0]  %s1203, 256, %s1201, %s1173, 128, 128, 8
        $region84: #{tpu_custom_call.1} parent=51 // pred_fallthru
          _
      $region52: #{tpu_custom_call.1} parent=5 // pred_fallthru
        _
      %p1209 = scmp.le.s32.totalorder 2, %s30
      // Predicated region
      $region85: #{tpu_custom_call.1} parent=5 // pred_check
        %p1210 = pneg %p1209
      $region86: #{tpu_custom_call.1} parent=5 // pred_check_branch
        %1212 = sbr.rel (%p1210) target = $region88
      $region87: #{tpu_custom_call.1} parent=5 // pred_region
        %s1213 = ssub.s32 %s30, 2
        // Predicated region
        $region89: #{tpu_custom_call.1} parent=87 // pred_check
          %p1214 = pneg %p247
        $region90: #{tpu_custom_call.1} parent=87 // pred_check_branch
          %1216 = sbr.rel (%p1214) target = $region92
        $region91: #{tpu_custom_call.1} parent=87 // pred_region
          %s1217 = sand.u32 %s232, 1
          %s1218 = scalar_lea.sflag [#allocation4], %s1217
          %s1219 = sand.u32 %s232, 1
          %s1220 = smul.addr %s1219, 16
          %s1221 = scalar_lea.vmem [#allocation13], %s1220
          %1222 = dma.done %s1218, 256
        $region92: #{tpu_custom_call.1} parent=87 // pred_fallthru
          _
        // Predicated region
        $region93: #{tpu_custom_call.1} parent=87 // pred_check
          %p1223 = pneg %p273
        $region94: #{tpu_custom_call.1} parent=87 // pred_check_branch
          %1225 = sbr.rel (%p1223) target = $region96
        $region95: #{tpu_custom_call.1} parent=87 // pred_region
          %s1226 = sand.u32 %s258, 1
          %s1227 = scalar_lea.sflag [#allocation15], %s1226
          %s1228 = sand.u32 %s258, 1
          %s1229 = smul.addr %s1228, 16
          %s1230 = scalar_lea.vmem [#allocation14], %s1229
          %1231 = dma.done %s1227, 256
        $region96: #{tpu_custom_call.1} parent=87 // pred_fallthru
          _
      $region88: #{tpu_custom_call.1} parent=5 // pred_fallthru
        _
    $region6: #{tpu_custom_call.1} parent=1 // loop_footer
      %s34 = sadd.s32 1, %s30
    $region7: #{tpu_custom_call.1} parent=1 // loop_footer_branch
      %29 = sbr.rel target = $region3
    $region8: #{tpu_custom_call.1} parent=1 // loop_exit
      _
    %1232 = vsyncpa [#allocation3], 1
    %s1233 = scalar_lea.sflag [#allocation3], 1
    %1234 = vsyncpa %s1233, 1
    %1235 = vsyncpa [#allocation6], 1
    %s1236 = scalar_lea.sflag [#allocation6], 1
    %1237 = vsyncpa %s1236, 1
    %1238 = vsyncpa [#allocation9], 1
    %1239 = vsyncpa [#allocation12], 1
    %1240 = vsyncpa [#allocation4], 1
    %s1241 = scalar_lea.sflag [#allocation4], 1
    %1242 = vsyncpa %s1241, 1
    %1243 = vsyncpa [#allocation15], 1
    %s1244 = scalar_lea.sflag [#allocation15], 1
    %1245 = vsyncpa %s1244, 1

</llo_original>
